<compile_context>
chip_gen: v5e
topology: v5e:2x2
jax: 0.10.0
libtpu: 0.0.40
codegen_flags: <defaults>
</compile_context>

<pallas_src>
import math

import jax
import jax.numpy as jnp
from jax.experimental import pallas as pl
from jax.experimental.pallas import tpu as pltpu


NUM_CONCEPTS = 128   # N
CONCEPT_DIM = 64     # D
LANE = 128           # TPU lane width (lane-dense last dim)


def _round_up(x, m):
    return ((x + m - 1) // m) * m


def _concept_bank_kernel(feat_ref, concepts_ref,
                         wm_ref, bm_ref,
                         w1_ref, b1_ref,
                         w2_ref, b2_ref,
                         field_ref, weights_ref):
    # feat_ref: [TB, D] bf16.  concepts/Wm/W1/W2: bf16 (resident).  biases: f32.
    feats = feat_ref[...]

    # concept_matcher: Linear(D -> N), f32 accumulation on the MXU.
    scores = jnp.dot(feats, wm_ref[...],
                     preferred_element_type=jnp.float32) + bm_ref[...]   # [TB, N] f32

    # Numerically stable softmax; reciprocal goes to the EUP slot.
    m = jnp.max(scores, axis=-1, keepdims=True)
    e = jnp.exp(scores - m)
    denom = jnp.sum(e, axis=-1, keepdims=True)
    weights = e * pl.reciprocal(denom, approx=False)                     # [TB, N]
    weights_ref[...] = weights

    # weighted_concepts = weights @ concepts
    wc = jnp.dot(weights.astype(jnp.bfloat16), concepts_ref[...],
                 preferred_element_type=jnp.float32)                     # [TB, D]

    # concept_to_field: Linear(D -> 2D) -> GELU(exact erf) -> Linear(2D -> D[padded])
    h = jnp.dot(wc.astype(jnp.bfloat16), w1_ref[...],
                preferred_element_type=jnp.float32) + b1_ref[...]        # [TB, 2D]
    inv_sqrt2 = jnp.float32(1.0 / math.sqrt(2.0))
    h = 0.5 * h * (1.0 + jax.lax.erf(h * inv_sqrt2))                     # exact GELU (nn.GELU default)
    out = jnp.dot(h.astype(jnp.bfloat16), w2_ref[...],
                  preferred_element_type=jnp.float32) + b2_ref[...]      # [TB, FP] (lane-dense)
    field_ref[...] = out


def concept_bank_forward(features, params, *, tb=256):
    """features: [B, D] float32. params: dict of pre-transposed f32 weights."""
    B, D = features.shape
    N, Dc = params["concepts"].shape
    assert D == Dc

    # Lane-dense padded width for the field output (avoid masked 64-wide stores).
    FP = _round_up(D, LANE)

    # Batch tile: fill the MXU M dimension for big batches (>=256 on v6e/v7x),
    # shrink to a sublane multiple for tiny batches.
    TB = min(tb, _round_up(B, 8))
    Bp = _round_up(B, TB)
    num_tiles = Bp // TB

    # bf16 MXU operands (accumulation stays f32 inside the kernel); biases f32.
    feats = features.astype(jnp.bfloat16)
    if Bp != B:
        feats = jnp.pad(feats, ((0, Bp - B), (0, 0)))
    concepts = params["concepts"].astype(jnp.bfloat16)
    wm = params["wm"].astype(jnp.bfloat16)
    w1 = params["w1"].astype(jnp.bfloat16)
    w2 = jnp.pad(params["w2"], ((0, 0), (0, FP - D))).astype(jnp.bfloat16)
    bm = params["bm"]
    b1 = params["b1"]
    b2 = jnp.pad(params["b2"], ((0, 0), (0, FP - D)))

    # Advisory cost estimate so XLA schedules the custom call sensibly.
    flops = Bp * (2 * D * N + 2 * N * D + 2 * D * (2 * D) + 2 * (2 * D) * FP)
    transcendentals = Bp * (N + 2 * D)                       # exp + erf
    bytes_accessed = (2 * Bp * D                             # bf16 feature stream
                      + 2 * (N * D + D * N + D * 2 * D + 2 * D * FP)   # bf16 weights
                      + 4 * (N + 2 * D + FP)                 # f32 biases
                      + 4 * Bp * (FP + N))                   # f32 outputs

    const = lambda shape: pl.BlockSpec(shape, lambda i, _s=shape: tuple(0 for _ in _s))

    field_p, weights_p = pl.pallas_call(
        _concept_bank_kernel,
        out_shape=(
            jax.ShapeDtypeStruct((Bp, FP), jnp.float32),   # field_contribution (padded)
            jax.ShapeDtypeStruct((Bp, N), jnp.float32),    # concept_weights
        ),
        grid=(num_tiles,),
        in_specs=[
            pl.BlockSpec((TB, D), lambda i: (i, 0)),   # features (streamed over batch)
            const((N, D)),        # concepts (VMEM-resident across grid steps)
            const((D, N)),        # Wm
            const((1, N)),        # bm
            const((D, 2 * D)),    # W1
            const((1, 2 * D)),    # b1
            const((2 * D, FP)),   # W2 (zero-padded to lane-dense output)
            const((1, FP)),       # b2 (zero-padded)
        ],
        out_specs=(
            pl.BlockSpec((TB, FP), lambda i: (i, 0)),
            pl.BlockSpec((TB, N), lambda i: (i, 0)),
        ),
        compiler_params=pltpu.CompilerParams(
            dimension_semantics=("parallel",)),
        cost_estimate=pl.CostEstimate(
            flops=int(flops),
            transcendentals=int(transcendentals),
            bytes_accessed=int(bytes_accessed)),
    )(feats, concepts, wm, bm, w1, b1, w2, b2)

    return field_p[:B, :D], weights_p[:B]


def init_params(key, num_concepts=NUM_CONCEPTS, concept_dim=CONCEPT_DIM):
    """Deterministic synthetic init mirroring the module's parameter shapes."""
    ks = jax.random.split(key, 7)
    D, N = concept_dim, num_concepts

    def lin(k, fan_in, fan_out):
        # uniform(-1/sqrt(fan_in), 1/sqrt(fan_in)) like torch.nn.Linear
        kw, kb = jax.random.split(k)
        bound = 1.0 / math.sqrt(fan_in)
        w = jax.random.uniform(kw, (fan_in, fan_out), jnp.float32, -bound, bound)
        b = jax.random.uniform(kb, (1, fan_out), jnp.float32, -bound, bound)
        return w, b

    concepts = 0.1 * jax.random.normal(ks[0], (N, D), jnp.float32)
    w1, b1 = lin(ks[1], D, 2 * D)          # concept_to_field[0]: Linear(D, 2D)
    w2, b2 = lin(ks[2], 2 * D, D)          # concept_to_field[2]: Linear(2D, D)
    wm, bm = lin(ks[3], D, N)              # concept_matcher:     Linear(D, N)
    return {"concepts": concepts, "w1": w1, "b1": b1,
            "w2": w2, "b2": b2, "wm": wm, "bm": bm}


def reference_forward(features, params):
    """Pure-JAX f32 reference for sanity checking the kernel."""
    scores = features @ params["wm"] + params["bm"]
    weights = jax.nn.softmax(scores, axis=-1)
    wc = weights @ params["concepts"]
    h = wc @ params["w1"] + params["b1"]
    h = 0.5 * h * (1.0 + jax.lax.erf(h / math.sqrt(2.0)))
    field = h @ params["w2"] + params["b2"]
    return field, weights


# TODO(synk): the adaptive_avg_pool1d fallback (when features.shape[-1] != concept_dim)
# is host-side glue in the original module; inputs here are built with concept_dim
# features so that branch is not exercised.

if __name__ == "__main__":
    key = jax.random.PRNGKey(0)
    k_params, k_feat1, k_feat2 = jax.random.split(key, 3)
    params = init_params(k_params)

    # Small single-tile batch.
    B1 = 8
    feats1 = jax.random.normal(k_feat1, (B1, CONCEPT_DIM), jnp.float32)
    field1, weights1 = concept_bank_forward(feats1, params)
    jax.block_until_ready((field1, weights1))

    ref_f1, ref_w1 = reference_forward(feats1, params)
    assert field1.shape == (B1, CONCEPT_DIM) and weights1.shape == (B1, NUM_CONCEPTS)
    # Tolerances loosened for bf16 MXU operands (f32 accumulation).
    assert jnp.allclose(field1, ref_f1, atol=2e-2, rtol=2e-2)
    assert jnp.allclose(weights1, ref_w1, atol=5e-3, rtol=0)
    assert jnp.allclose(jnp.sum(weights1, axis=-1), 1.0, atol=1e-3)

    # Multi-tile batch: exercises the batch grid + zero-padded last tile.
    B2 = 300
    feats2 = jax.random.normal(k_feat2, (B2, CONCEPT_DIM), jnp.float32)
    field2, weights2 = concept_bank_forward(feats2, params, tb=128)
    jax.block_until_ready((field2, weights2))

    ref_f2, ref_w2 = reference_forward(feats2, params)
    assert field2.shape == (B2, CONCEPT_DIM) and weights2.shape == (B2, NUM_CONCEPTS)
    assert jnp.allclose(field2, ref_f2, atol=2e-2, rtol=2e-2)
    assert jnp.allclose(weights2, ref_w2, atol=5e-3, rtol=0)

    print("KERNEL_OK")
</pallas_src>

<mosaic_0001>
module attributes {stable_mosaic.version = 11 : i64} {
  func.func @_concept_bank_kernel(%arg0: i32, %arg1: memref<8x64xbf16, #tpu.memory_space<vmem>>, %arg2: memref<128x64xbf16, #tpu.memory_space<vmem>>, %arg3: memref<64x128xbf16, #tpu.memory_space<vmem>>, %arg4: memref<1x128xf32, #tpu.memory_space<vmem>>, %arg5: memref<64x128xbf16, #tpu.memory_space<vmem>>, %arg6: memref<1x128xf32, #tpu.memory_space<vmem>>, %arg7: memref<128x128xbf16, #tpu.memory_space<vmem>>, %arg8: memref<1x128xf32, #tpu.memory_space<vmem>>, %arg9: memref<8x128xf32, #tpu.memory_space<vmem>>, %arg10: memref<8x128xf32, #tpu.memory_space<vmem>>) attributes {dimension_semantics = [#tpu.dimension_semantics<parallel>], iteration_bounds = array<i64: 1>, scalar_prefetch = 0 : i64, scratch_operands = 0 : i64, tpu.core_type = #tpu.core_type<tc>, window_params = [{transform_indices = @transform_0, window_bounds = array<i64: 8, 64>}, {pipeline_mode = #tpu.pipeline_mode<synchronous>, transform_indices = @transform_1, window_bounds = array<i64: 128, 64>}, {pipeline_mode = #tpu.pipeline_mode<synchronous>, transform_indices = @transform_2, window_bounds = array<i64: 64, 128>}, {pipeline_mode = #tpu.pipeline_mode<synchronous>, transform_indices = @transform_3, window_bounds = array<i64: 1, 128>}, {pipeline_mode = #tpu.pipeline_mode<synchronous>, transform_indices = @transform_4, window_bounds = array<i64: 64, 128>}, {pipeline_mode = #tpu.pipeline_mode<synchronous>, transform_indices = @transform_5, window_bounds = array<i64: 1, 128>}, {pipeline_mode = #tpu.pipeline_mode<synchronous>, transform_indices = @transform_6, window_bounds = array<i64: 128, 128>}, {pipeline_mode = #tpu.pipeline_mode<synchronous>, transform_indices = @transform_7, window_bounds = array<i64: 1, 128>}, {transform_indices = @transform_8, window_bounds = array<i64: 8, 128>}, {transform_indices = @transform_9, window_bounds = array<i64: 8, 128>}]} {
    %c0 = arith.constant 0 : index
    %c0_0 = arith.constant 0 : index
    %0 = vector.load %arg1[%c0, %c0_0] : memref<8x64xbf16, #tpu.memory_space<vmem>>, vector<8x64xbf16>
    %c0_1 = arith.constant 0 : index
    %c0_2 = arith.constant 0 : index
    %1 = vector.load %arg3[%c0_1, %c0_2] : memref<64x128xbf16, #tpu.memory_space<vmem>>, vector<64x128xbf16>
    %cst = arith.constant dense<0.000000e+00> : vector<8x128xf32>
    %2 = tpu.matmul %0, %1, %cst {dimension_numbers = #tpu.dot_dimension_numbers<[1], [0], [0], [1], [0, 0, 1, 1], [], []>} : vector<8x64xbf16>, vector<64x128xbf16>, vector<8x128xf32> -> vector<8x128xf32>
    %c0_3 = arith.constant 0 : index
    %c0_4 = arith.constant 0 : index
    %3 = vector.load %arg4[%c0_3, %c0_4] : memref<1x128xf32, #tpu.memory_space<vmem>>, vector<1x128xf32>
    %4 = vector.broadcast %3 : vector<1x128xf32> to vector<8x128xf32>
    %5 = arith.addf %2, %4 : vector<8x128xf32>
    %cst_5 = arith.constant dense<0xFF800000> : vector<8xf32>
    %6 = vector.multi_reduction <maximumf>, %5, %cst_5 [1] : vector<8x128xf32> to vector<8xf32>
    %7 = vector.shape_cast %6 : vector<8xf32> to vector<8x1xf32>
    %8 = vector.broadcast %7 : vector<8x1xf32> to vector<8x128xf32>
    %9 = arith.subf %5, %8 : vector<8x128xf32>
    %10 = math.exp %9 : vector<8x128xf32>
    %cst_6 = arith.constant dense<0.000000e+00> : vector<8xf32>
    %11 = vector.multi_reduction <add>, %10, %cst_6 [1] : vector<8x128xf32> to vector<8xf32>
    %12 = vector.shape_cast %11 : vector<8xf32> to vector<8x1xf32>
    %13 = tpu.reciprocal %12 : vector<8x1xf32> -> vector<8x1xf32>
    %14 = vector.broadcast %13 : vector<8x1xf32> to vector<8x128xf32>
    %15 = arith.mulf %10, %14 : vector<8x128xf32>
    %c0_7 = arith.constant 0 : index
    %c0_8 = arith.constant 0 : index
    %16 = vector.load %arg10[%c0_7, %c0_8] : memref<8x128xf32, #tpu.memory_space<vmem>>, vector<8x128xf32>
    tpu.vector_store %arg10[%c0_7, %c0_8], %15 {strides = array<i32>} : memref<8x128xf32, #tpu.memory_space<vmem>>, vector<8x128xf32>,
    %17 = arith.truncf %15 : vector<8x128xf32> to vector<8x128xbf16>
    %c0_9 = arith.constant 0 : index
    %c0_10 = arith.constant 0 : index
    %18 = vector.load %arg2[%c0_9, %c0_10] : memref<128x64xbf16, #tpu.memory_space<vmem>>, vector<128x64xbf16>
    %cst_11 = arith.constant dense<0.000000e+00> : vector<8x64xf32>
    %19 = tpu.matmul %17, %18, %cst_11 {dimension_numbers = #tpu.dot_dimension_numbers<[1], [0], [0], [1], [0, 0, 1, 1], [], []>} : vector<8x128xbf16>, vector<128x64xbf16>, vector<8x64xf32> -> vector<8x64xf32>
    %20 = arith.truncf %19 : vector<8x64xf32> to vector<8x64xbf16>
    %c0_12 = arith.constant 0 : index
    %c0_13 = arith.constant 0 : index
    %21 = vector.load %arg5[%c0_12, %c0_13] : memref<64x128xbf16, #tpu.memory_space<vmem>>, vector<64x128xbf16>
    %cst_14 = arith.constant dense<0.000000e+00> : vector<8x128xf32>
    %22 = tpu.matmul %20, %21, %cst_14 {dimension_numbers = #tpu.dot_dimension_numbers<[1], [0], [0], [1], [0, 0, 1, 1], [], []>} : vector<8x64xbf16>, vector<64x128xbf16>, vector<8x128xf32> -> vector<8x128xf32>
    %c0_15 = arith.constant 0 : index
    %c0_16 = arith.constant 0 : index
    %23 = vector.load %arg6[%c0_15, %c0_16] : memref<1x128xf32, #tpu.memory_space<vmem>>, vector<1x128xf32>
    %24 = vector.broadcast %23 : vector<1x128xf32> to vector<8x128xf32>
    %25 = arith.addf %22, %24 : vector<8x128xf32>
    %cst_17 = arith.constant 5.000000e-01 : f32
    %26 = vector.broadcast %cst_17 : f32 to vector<8x128xf32>
    %27 = arith.mulf %26, %25 : vector<8x128xf32>
    %cst_18 = arith.constant 0.707106769 : f32
    %28 = vector.broadcast %cst_18 : f32 to vector<8x128xf32>
    %29 = arith.mulf %25, %28 : vector<8x128xf32>
    %30 = math.erf %29 : vector<8x128xf32>
    %cst_19 = arith.constant 1.000000e+00 : f32
    %31 = vector.broadcast %cst_19 : f32 to vector<8x128xf32>
    %32 = arith.addf %31, %30 : vector<8x128xf32>
    %33 = arith.mulf %27, %32 : vector<8x128xf32>
    %34 = arith.truncf %33 : vector<8x128xf32> to vector<8x128xbf16>
    %c0_20 = arith.constant 0 : index
    %c0_21 = arith.constant 0 : index
    %35 = vector.load %arg7[%c0_20, %c0_21] : memref<128x128xbf16, #tpu.memory_space<vmem>>, vector<128x128xbf16>
    %cst_22 = arith.constant dense<0.000000e+00> : vector<8x128xf32>
    %36 = tpu.matmul %34, %35, %cst_22 {dimension_numbers = #tpu.dot_dimension_numbers<[1], [0], [0], [1], [0, 0, 1, 1], [], []>} : vector<8x128xbf16>, vector<128x128xbf16>, vector<8x128xf32> -> vector<8x128xf32>
    %c0_23 = arith.constant 0 : index
    %c0_24 = arith.constant 0 : index
    %37 = vector.load %arg8[%c0_23, %c0_24] : memref<1x128xf32, #tpu.memory_space<vmem>>, vector<1x128xf32>
    %38 = vector.broadcast %37 : vector<1x128xf32> to vector<8x128xf32>
    %39 = arith.addf %36, %38 : vector<8x128xf32>
    %c0_25 = arith.constant 0 : index
    %c0_26 = arith.constant 0 : index
    %40 = vector.load %arg9[%c0_25, %c0_26] : memref<8x128xf32, #tpu.memory_space<vmem>>, vector<8x128xf32>
    tpu.vector_store %arg9[%c0_25, %c0_26], %39 {strides = array<i32>} : memref<8x128xf32, #tpu.memory_space<vmem>>, vector<8x128xf32>,
    return
  }
  func.func @transform_0(%arg0: i32) -> (i32, i32) {
    %c0_i32 = arith.constant 0 : i32
    %c0_i32_0 = arith.constant 0 : i32
    return %arg0, %c0_i32 : i32, i32
  }
  func.func @transform_1(%arg0: i32) -> (i32, i32) {
    %c0_i32 = arith.constant 0 : i32
    %c0_i32_0 = arith.constant 0 : i32
    %c0_i32_1 = arith.constant 0 : i32
    return %c0_i32, %c0_i32_0 : i32, i32
  }
  func.func @transform_2(%arg0: i32) -> (i32, i32) {
    %c0_i32 = arith.constant 0 : i32
    %c0_i32_0 = arith.constant 0 : i32
    %c0_i32_1 = arith.constant 0 : i32
    return %c0_i32, %c0_i32_0 : i32, i32
  }
  func.func @transform_3(%arg0: i32) -> (i32, i32) {
    %c0_i32 = arith.constant 0 : i32
    %c0_i32_0 = arith.constant 0 : i32
    %c0_i32_1 = arith.constant 0 : i32
    return %c0_i32, %c0_i32_0 : i32, i32
  }
  func.func @transform_4(%arg0: i32) -> (i32, i32) {
    %c0_i32 = arith.constant 0 : i32
    %c0_i32_0 = arith.constant 0 : i32
    %c0_i32_1 = arith.constant 0 : i32
    return %c0_i32, %c0_i32_0 : i32, i32
  }
  func.func @transform_5(%arg0: i32) -> (i32, i32) {
    %c0_i32 = arith.constant 0 : i32
    %c0_i32_0 = arith.constant 0 : i32
    %c0_i32_1 = arith.constant 0 : i32
    return %c0_i32, %c0_i32_0 : i32, i32
  }
  func.func @transform_6(%arg0: i32) -> (i32, i32) {
    %c0_i32 = arith.constant 0 : i32
    %c0_i32_0 = arith.constant 0 : i32
    %c0_i32_1 = arith.constant 0 : i32
    return %c0_i32, %c0_i32_0 : i32, i32
  }
  func.func @transform_7(%arg0: i32) -> (i32, i32) {
    %c0_i32 = arith.constant 0 : i32
    %c0_i32_0 = arith.constant 0 : i32
    %c0_i32_1 = arith.constant 0 : i32
    return %c0_i32, %c0_i32_0 : i32, i32
  }
  func.func @transform_8(%arg0: i32) -> (i32, i32) {
    %c0_i32 = arith.constant 0 : i32
    %c0_i32_0 = arith.constant 0 : i32
    return %arg0, %c0_i32 : i32, i32
  }
  func.func @transform_9(%arg0: i32) -> (i32, i32) {
    %c0_i32 = arith.constant 0 : i32
    %c0_i32_0 = arith.constant 0 : i32
    return %arg0, %c0_i32 : i32, i32
  }
}

</mosaic_0001>

<llo_original>
// kernel: tpu_custom_call.1
$region0: #{tpu_custom_call.1}
  #allocation0 [shape = 'u32[]', space=smem, size = 0x4, offset = 0x4, fixed_abs, tag = 'smem constant byte address 0x4 - core index']
  #allocation1 [shape = 'u32[72,128]{1,0:T(1,128)}', space=vmem, size = 0x9000, scoped, tag = 'internal scratch']
  %s0 = inlined_call_operand.vmem [shape: bf16[8,64], index: 0, kind: input, shape index: {}]
  %s1 = inlined_call_operand.vmem [shape: bf16[128,64], index: 1, kind: input, shape index: {}]
  %s2 = inlined_call_operand.vmem [shape: bf16[64,128], index: 2, kind: input, shape index: {}]
  %s3 = inlined_call_operand.vmem [shape: f32[1,128], index: 3, kind: input, shape index: {}]
  %s4 = inlined_call_operand.hbm [shape: bf16[64,128], index: 4, kind: input, shape index: {}]
  %s5 = inlined_call_operand.hbm [shape: f32[1,128], index: 5, kind: input, shape index: {}]
  %s6 = inlined_call_operand.vmem [shape: bf16[128,128], index: 6, kind: input, shape index: {}]
  %s7 = inlined_call_operand.hbm [shape: f32[1,128], index: 7, kind: input, shape index: {}]
  %s8 = inlined_call_operand.hbm [shape: f32[8,128], index: 8, kind: output, shape index: {0}]
  %s9 = inlined_call_operand.hbm [shape: f32[8,128], index: 9, kind: output, shape index: {1}]
  %10 = xla_tuple %s8, %s9
  %s11 = sld [smem:[#allocation0]]
  $region62: #{tpu_custom_call.1} parent=0
    _
  %s13 = ssub.s32 1, %s11
  %s14 = scalar_select 0, %s13, %s11
  $region1: #{tpu_custom_call.1} parent=0
    #allocation2 [shape = 'u8[16384]{0}', space=vmem, size = 0x4000, scoped, tag = 'input window, operand 4, single buffered']
    #allocation3 [shape = 's32[1]{0}', space=sflag, size = 0x4, scoped, tag = 'scoped memory for tpu_custom_call.1']
    #allocation4 [shape = 's32[1]{0}', space=sflag, size = 0x4, scoped, tag = 'scoped memory for tpu_custom_call.1']
    #allocation5 [shape = 'u8[512]{0}', space=vmem, size = 0x400, scoped, tag = 'input window, operand 5, single buffered']
    #allocation6 [shape = 's32[1]{0}', space=sflag, size = 0x4, scoped, tag = 'scoped memory for tpu_custom_call.1']
    #allocation7 [shape = 'u8[512]{0}', space=vmem, size = 0x400, scoped, tag = 'input window, operand 7, single buffered']
    #allocation8 [shape = 'u8[4096]{0}', space=vmem, size = 0x1000, scoped, tag = 'output window, operand 0, single buffered']
    #allocation9 [shape = 'u8[4096]{0}', space=vmem, size = 0x1000, scoped, tag = 'output window, operand 1, single buffered']
    #allocation10 [shape = 's32[1]{0}', space=sflag, size = 0x4, scoped, tag = 'scoped memory for tpu_custom_call.1']
    %15 = vsyncpa [#allocation3], 0
    %16 = vsyncpa [#allocation6], 0
    %17 = vsyncpa [#allocation4], 0
    %18 = vsyncpa [#allocation10], 0
    // Predicated region
    $region2: #{tpu_custom_call.1} parent=1 // pred_check
      _
    $region3: #{tpu_custom_call.1} parent=1 // pred_check_branch
      %20 = sbr.rel (0) target = $region5
    $region4: #{tpu_custom_call.1} parent=1 // pred_region
      _
    $region5: #{tpu_custom_call.1} parent=1 // pred_fallthru
      _
    // Predicated region
    $region6: #{tpu_custom_call.1} parent=1 // pred_check
      _
    $region7: #{tpu_custom_call.1} parent=1 // pred_check_branch
      %22 = sbr.rel (0) target = $region9
    $region8: #{tpu_custom_call.1} parent=1 // pred_region
      _
    $region9: #{tpu_custom_call.1} parent=1 // pred_fallthru
      _
    // Predicated region
    $region10: #{tpu_custom_call.1} parent=1 // pred_check
      _
    $region11: #{tpu_custom_call.1} parent=1 // pred_check_branch
      %24 = sbr.rel (0) target = $region13
    $region12: #{tpu_custom_call.1} parent=1 // pred_region
      _
    $region13: #{tpu_custom_call.1} parent=1 // pred_fallthru
      _
    // Predicated region
    $region14: #{tpu_custom_call.1} parent=1 // pred_check
      _
    $region15: #{tpu_custom_call.1} parent=1 // pred_check_branch
      %26 = sbr.rel (0) target = $region17
    $region16: #{tpu_custom_call.1} parent=1 // pred_region
      _
    $region17: #{tpu_custom_call.1} parent=1 // pred_fallthru
      _
    // Predicated region
    $region18: #{tpu_custom_call.1} parent=1 // pred_check
      _
    $region19: #{tpu_custom_call.1} parent=1 // pred_check_branch
      %28 = sbr.rel (0) target = $region21
    $region20: #{tpu_custom_call.1} parent=1 // pred_region
      %30 = vsyncadd [#allocation3], 0
      %s31 = sshll.u32 %s4, 4
      %s32 = int_to_ptr.hbm [resolvable:$true] %s31
      %s33 = sshll.u32 [#allocation2], 4
      %s34 = int_to_ptr.vmem [resolvable:$true] %s33
      %39 = dma.hbm_to_vmem [thread:$0]  %s32, 512, %s34, [#allocation3], 64, 64, 4
    $region21: #{tpu_custom_call.1} parent=1 // pred_fallthru
      _
    // Predicated region
    $region22: #{tpu_custom_call.1} parent=1 // pred_check
      _
    $region23: #{tpu_custom_call.1} parent=1 // pred_check_branch
      %41 = sbr.rel (0) target = $region25
    $region24: #{tpu_custom_call.1} parent=1 // pred_region
      %43 = vsyncadd [#allocation6], 0
      %s45 = sshll.u32 %s5, 4
      %s46 = int_to_ptr.hbm [resolvable:$true] %s45
      %s47 = sshll.u32 [#allocation5], 4
      %s48 = int_to_ptr.vmem [resolvable:$true] %s47
      %50 = dma.hbm_to_vmem [thread:$0]  %s46, 16, %s48, [#allocation6]
    $region25: #{tpu_custom_call.1} parent=1 // pred_fallthru
      _
    // Predicated region
    $region26: #{tpu_custom_call.1} parent=1 // pred_check
      _
    $region27: #{tpu_custom_call.1} parent=1 // pred_check_branch
      %52 = sbr.rel (0) target = $region29
    $region28: #{tpu_custom_call.1} parent=1 // pred_region
      _
    $region29: #{tpu_custom_call.1} parent=1 // pred_fallthru
      _
    // Predicated region
    $region30: #{tpu_custom_call.1} parent=1 // pred_check
      _
    $region31: #{tpu_custom_call.1} parent=1 // pred_check_branch
      %54 = sbr.rel (0) target = $region33
    $region32: #{tpu_custom_call.1} parent=1 // pred_region
      %56 = vsyncadd [#allocation6], 0
      %s58 = sshll.u32 %s7, 4
      %s59 = int_to_ptr.hbm [resolvable:$true] %s58
      %s60 = sshll.u32 [#allocation7], 4
      %s61 = int_to_ptr.vmem [resolvable:$true] %s60
      %63 = dma.hbm_to_vmem [thread:$0]  %s59, 16, %s61, [#allocation6]
    $region33: #{tpu_custom_call.1} parent=1 // pred_fallthru
      _
    // Predicated region
    $region34: #{tpu_custom_call.1} parent=1 // pred_check
      _
    $region35: #{tpu_custom_call.1} parent=1 // pred_check_branch
      %65 = sbr.rel (0) target = $region37
    $region36: #{tpu_custom_call.1} parent=1 // pred_region
      %67 = dma.done [#allocation3], 512
    $region37: #{tpu_custom_call.1} parent=1 // pred_fallthru
      _
    // Predicated region
    $region38: #{tpu_custom_call.1} parent=1 // pred_check
      _
    $region39: #{tpu_custom_call.1} parent=1 // pred_check_branch
      %69 = sbr.rel (0) target = $region41
    $region40: #{tpu_custom_call.1} parent=1 // pred_region
      %71 = dma.done [#allocation6], 16
    $region41: #{tpu_custom_call.1} parent=1 // pred_fallthru
      _
    // Predicated region
    $region42: #{tpu_custom_call.1} parent=1 // pred_check
      _
    $region43: #{tpu_custom_call.1} parent=1 // pred_check_branch
      %73 = sbr.rel (0) target = $region45
    $region44: #{tpu_custom_call.1} parent=1 // pred_region
      %75 = dma.done [#allocation6], 16
    $region45: #{tpu_custom_call.1} parent=1 // pred_fallthru
      _
    %v77 = vld [vmem:[%s0] sm:$0xf]
    %v78 = vld [vmem:[%s2] sm:$0xf]
    %v79 = vld [vmem:[%s2 + $0x4] sm:$0xf]
    %v80 = vld [vmem:[%s2 + $0x8] sm:$0xf]
    %v81 = vld [vmem:[%s2 + $0xc] sm:$0xf]
    %v82 = vld [vmem:[%s2 + $0x10] sm:$0xf]
    %v83 = vld [vmem:[%s2 + $0x14] sm:$0xf]
    %v84 = vld [vmem:[%s2 + $0x18] sm:$0xf]
    %v85 = vld [vmem:[%s2 + $0x1c] sm:$0xf]
    %v86 = vld [vmem:[%s3] sm:$0x1]
    %v88 = vperm.slane %v86, 0
    %v98 = vunpack.c.l.b16 %v78
    %v99 = vunpack.c.l.b16 %v79
    %v100 = vunpack.c.l.b16 %v80
    %v101 = vunpack.c.l.b16 %v81
    %v102 = vunpack.c.l.b16 %v82
    %v103 = vunpack.c.l.b16 %v83
    %v104 = vunpack.c.l.b16 %v84
    %v105 = vunpack.c.l.b16 %v85
    %v106 = vpack.c.b16 %v99, %v98
    %v107 = vpack.c.b16 %v101, %v100
    %v108 = vpack.c.b16 %v103, %v102
    %v109 = vpack.c.b16 %v105, %v104
    %vm114 = vcmask 523264
    %v116 = vsel %vm114, %v77, 0
    %118 = vmatpush.bf16.msra.mxu0 0
    %119 = vmatpush.bf16.msra.mxu0 0
    %120 = vmatpush.bf16.msra.mxu0 0
    %121 = vmatpush.bf16.msra.mxu0 0
    %122 = vmatpush.bf16.msra.mxu0 %v109
    %123 = vmatpush.bf16.msra.mxu0 %v108
    %124 = vmatpush.bf16.msra.mxu0 %v107
    %125 = vmatpush.bf16.msra.mxu0 %v106
    %126 = vmatmul.bf16.gmra.mxu0 %v116
    %v127 = vpop.f32.mrf.mxu0
    %v128 = vadd.f32 %v88, %v127
    %v129 = vpop.f32.mrf.mxu0
    %130 = vdwg.mxu0
    %131 = vmax.xlane.f32.xlu0 %v128
    %v132 = vpop.xlane.xlu0 %131
    %v133 = vsub.f32 %v128, %v132
    %v134 = vmul.f32 %v133, 1.442695
    %v135 = vpow.pop %v134
    %136 = vadd.xlane.f32.xlu0 %v135
    %v137 = vpop.xlane.xlu0 %136
    %v138 = vrcp.pop %v137
    %v139 = vmul.f32 %v137, %v138
    %v140 = vsub.f32 1.0, %v139
    %v141 = vmul.f32 %v138, %v140
    %v142 = vadd.f32 %v138, %v141
    %vm143 = vweird.f32 %v137
    %vm144 = vweird.f32 %v138
    %vm145 = vmor %vm143, %vm144
    %v146 = vsel %vm145, %v138, %v142
    %v147 = vand.u32 2147483647, %v137
    %vm148 = vcmp.eq.f32.partialorder %v147, 8.507059e+37
    %v149 = vand.u32 %v137, 2147483648
    %v150 = vor.u32 1.1754944e-38, %v149
    %v151 = vsel %vm148, %v150, %v146
    %v152 = vmul.f32 %v135, %v151
    %153 = vst [vmem:[#allocation9] sm:$0xff] %v152
    %v154 = vpack.c.bf16 %v152, %v152
    %v155 = vld [vmem:[%s1] sm:$0xf]
    %v156 = vld [vmem:[%s1 + $0x4] sm:$0xf]
    %v157 = vld [vmem:[%s1 + $0x8] sm:$0xf]
    %v158 = vld [vmem:[%s1 + $0xc] sm:$0xf]
    %v159 = vld [vmem:[%s1 + $0x10] sm:$0xf]
    %v160 = vld [vmem:[%s1 + $0x14] sm:$0xf]
    %v161 = vld [vmem:[%s1 + $0x18] sm:$0xf]
    %v162 = vld [vmem:[%s1 + $0x1c] sm:$0xf]
    %v163 = vld [vmem:[%s1 + $0x20] sm:$0xf]
    %v164 = vld [vmem:[%s1 + $0x24] sm:$0xf]
    %v165 = vld [vmem:[%s1 + $0x28] sm:$0xf]
    %v166 = vld [vmem:[%s1 + $0x2c] sm:$0xf]
    %v167 = vld [vmem:[%s1 + $0x30] sm:$0xf]
    %v168 = vld [vmem:[%s1 + $0x34] sm:$0xf]
    %v169 = vld [vmem:[%s1 + $0x38] sm:$0xf]
    %v170 = vld [vmem:[%s1 + $0x3c] sm:$0xf]
    %v187 = vunpack.c.l.b16 %v155
    %v188 = vunpack.c.l.b16 %v156
    %v189 = vunpack.c.l.b16 %v157
    %v190 = vunpack.c.l.b16 %v158
    %v191 = vunpack.c.l.b16 %v159
    %v192 = vunpack.c.l.b16 %v160
    %v193 = vunpack.c.l.b16 %v161
    %v194 = vunpack.c.l.b16 %v162
    %v195 = vunpack.c.l.b16 %v163
    %v196 = vunpack.c.l.b16 %v164
    %v197 = vunpack.c.l.b16 %v165
    %v198 = vunpack.c.l.b16 %v166
    %v199 = vunpack.c.l.b16 %v167
    %v200 = vunpack.c.l.b16 %v168
    %v201 = vunpack.c.l.b16 %v169
    %v202 = vunpack.c.l.b16 %v170
    %v203 = vpack.c.b16 %v188, %v187
    %v204 = vpack.c.b16 %v190, %v189
    %v205 = vpack.c.b16 %v192, %v191
    %v206 = vpack.c.b16 %v194, %v193
    %v207 = vpack.c.b16 %v196, %v195
    %v208 = vpack.c.b16 %v198, %v197
    %v209 = vpack.c.b16 %v200, %v199
    %v210 = vpack.c.b16 %v202, %v201
    %219 = vmatpush.bf16.msra.mxu0 %v210
    %220 = vmatpush.bf16.msra.mxu0 %v209
    %221 = vmatpush.bf16.msra.mxu0 %v208
    %222 = vmatpush.bf16.msra.mxu0 %v207
    %223 = vmatpush.bf16.msra.mxu0 %v206
    %224 = vmatpush.bf16.msra.mxu0 %v205
    %225 = vmatpush.bf16.msra.mxu0 %v204
    %226 = vmatpush.bf16.msra.mxu0 %v203
    %227 = vmatmul.bf16.gmra.mxu0 %v154
    %v228 = vpop.f32.mrf.mxu0
    %v229 = vadd.f32 0.0, %v228
    %v230 = vpop.f32.mrf.mxu0
    %231 = vdwg.mxu0
    %v232 = vpack.c.bf16 %v229, %v229
    %v233 = vld [vmem:[#allocation2] sm:$0xf]
    %v234 = vld [vmem:[#allocation2 + $0x4] sm:$0xf]
    %v235 = vld [vmem:[#allocation2 + $0x8] sm:$0xf]
    %v236 = vld [vmem:[#allocation2 + $0xc] sm:$0xf]
    %v237 = vld [vmem:[#allocation2 + $0x10] sm:$0xf]
    %v238 = vld [vmem:[#allocation2 + $0x14] sm:$0xf]
    %v239 = vld [vmem:[#allocation2 + $0x18] sm:$0xf]
    %v240 = vld [vmem:[#allocation2 + $0x1c] sm:$0xf]
    %v241 = vld [vmem:[#allocation5] sm:$0x1]
    %v243 = vperm.slane %v241, 0
    %v253 = vunpack.c.l.b16 %v233
    %v254 = vunpack.c.l.b16 %v234
    %v255 = vunpack.c.l.b16 %v235
    %v256 = vunpack.c.l.b16 %v236
    %v257 = vunpack.c.l.b16 %v237
    %v258 = vunpack.c.l.b16 %v238
    %v259 = vunpack.c.l.b16 %v239
    %v260 = vunpack.c.l.b16 %v240
    %v261 = vpack.c.b16 %v254, %v253
    %v262 = vpack.c.b16 %v256, %v255
    %v263 = vpack.c.b16 %v258, %v257
    %v264 = vpack.c.b16 %v260, %v259
    %v270 = vsel %vm114, %v232, 0
    %272 = vmatpush.bf16.msra.mxu0 0
    %273 = vmatpush.bf16.msra.mxu0 0
    %274 = vmatpush.bf16.msra.mxu0 0
    %275 = vmatpush.bf16.msra.mxu0 0
    %276 = vmatpush.bf16.msra.mxu0 %v264
    %277 = vmatpush.bf16.msra.mxu0 %v263
    %278 = vmatpush.bf16.msra.mxu0 %v262
    %279 = vmatpush.bf16.msra.mxu0 %v261
    %280 = vmatmul.bf16.gmra.mxu0 %v270
    %v281 = vpop.f32.mrf.mxu0
    %v282 = vadd.f32 %v243, %v281
    %v283 = vpop.f32.mrf.mxu0
    %284 = vdwg.mxu0
    %v285 = vmul.f32 %v282, 0.5
    %v286 = vmul.f32 %v282, 0.70710677
    %v287 = vmul.f32 %v286, %v286
    %v288 = vmin.f32 16.0, %v287
    %v289 = vmul.f32 %v288, 2.1237322e-06
    %v290 = vadd.f32 %v289, 0.00028619796
    %v291 = vmul.f32 %v288, %v290
    %v292 = vadd.f32 %v291, 0.0036580483
    %v293 = vmul.f32 %v288, %v292
    %v294 = vadd.f32 %v293, 0.05243302
    %v295 = vmul.f32 %v288, %v294
    %v296 = vadd.f32 %v295, 0.18741608
    %v297 = vmul.f32 %v288, %v296
    %v298 = vadd.f32 %v297, 1.1283791
    %v299 = vmul.f32 %v286, %v298
    %v300 = vmul.f32 %v288, 3.8918573e-05
    %v301 = vadd.f32 %v300, 0.001143296
    %v302 = vmul.f32 %v288, %v301
    %v303 = vadd.f32 %v302, 0.014752088
    %v304 = vmul.f32 %v288, %v303
    %v305 = vadd.f32 %v304, 0.112945676
    %v306 = vmul.f32 %v288, %v305
    %v307 = vadd.f32 %v306, 0.4994258
    %v308 = vmul.f32 %v288, %v307
    %v309 = vadd.f32 %v308, 1.0
    %v310 = vrcp.pop %v309
    %v311 = vmul.f32 %v309, %v310
    %v312 = vsub.f32 1.0, %v311
    %v313 = vmul.f32 %v310, %v312
    %v314 = vadd.f32 %v310, %v313
    %vm315 = vweird.f32 %v309
    %vm316 = vweird.f32 %v310
    %vm317 = vmor %vm315, %vm316
    %v318 = vsel %vm317, %v310, %v314
    %v319 = vand.u32 2147483647, %v309
    %vm320 = vcmp.eq.f32.partialorder %v319, 8.507059e+37
    %v321 = vand.u32 %v309, 2147483648
    %v322 = vor.u32 1.1754944e-38, %v321
    %v323 = vsel %vm320, %v322, %v318
    %v324 = vmul.f32 %v299, %v323
    %v325 = vmin.f32 %v324, 1.0
    %v326 = vmax.f32 %v325, -1.0
    %v327 = vadd.f32 %v326, 1.0
    %v328 = vmul.f32 %v285, %v327
    %v329 = vpack.c.bf16 %v328, %v328
    %v330 = vld [vmem:[%s6] sm:$0xf]
    %v331 = vld [vmem:[%s6 + $0x4] sm:$0xf]
    %v332 = vld [vmem:[%s6 + $0x8] sm:$0xf]
    %v333 = vld [vmem:[%s6 + $0xc] sm:$0xf]
    %v334 = vld [vmem:[%s6 + $0x10] sm:$0xf]
    %v335 = vld [vmem:[%s6 + $0x14] sm:$0xf]
    %v336 = vld [vmem:[%s6 + $0x18] sm:$0xf]
    %v337 = vld [vmem:[%s6 + $0x1c] sm:$0xf]
    %v338 = vld [vmem:[%s6 + $0x20] sm:$0xf]
    %v339 = vld [vmem:[%s6 + $0x24] sm:$0xf]
    %v340 = vld [vmem:[%s6 + $0x28] sm:$0xf]
    %v341 = vld [vmem:[%s6 + $0x2c] sm:$0xf]
    %v342 = vld [vmem:[%s6 + $0x30] sm:$0xf]
    %v343 = vld [vmem:[%s6 + $0x34] sm:$0xf]
    %v344 = vld [vmem:[%s6 + $0x38] sm:$0xf]
    %v345 = vld [vmem:[%s6 + $0x3c] sm:$0xf]
    %v346 = vld [vmem:[#allocation7] sm:$0x1]
    %v348 = vperm.slane %v346, 0
    %v366 = vunpack.c.l.b16 %v330
    %v367 = vunpack.c.l.b16 %v331
    %v368 = vunpack.c.l.b16 %v332
    %v369 = vunpack.c.l.b16 %v333
    %v370 = vunpack.c.l.b16 %v334
    %v371 = vunpack.c.l.b16 %v335
    %v372 = vunpack.c.l.b16 %v336
    %v373 = vunpack.c.l.b16 %v337
    %v374 = vunpack.c.l.b16 %v338
    %v375 = vunpack.c.l.b16 %v339
    %v376 = vunpack.c.l.b16 %v340
    %v377 = vunpack.c.l.b16 %v341
    %v378 = vunpack.c.l.b16 %v342
    %v379 = vunpack.c.l.b16 %v343
    %v380 = vunpack.c.l.b16 %v344
    %v381 = vunpack.c.l.b16 %v345
    %v382 = vpack.c.b16 %v367, %v366
    %v383 = vpack.c.b16 %v369, %v368
    %v384 = vpack.c.b16 %v371, %v370
    %v385 = vpack.c.b16 %v373, %v372
    %v386 = vpack.c.b16 %v375, %v374
    %v387 = vpack.c.b16 %v377, %v376
    %v388 = vpack.c.b16 %v379, %v378
    %v389 = vpack.c.b16 %v381, %v380
    %398 = vmatpush.bf16.msra.mxu0 %v389
    %399 = vmatpush.bf16.msra.mxu0 %v388
    %400 = vmatpush.bf16.msra.mxu0 %v387
    %401 = vmatpush.bf16.msra.mxu0 %v386
    %402 = vmatpush.bf16.msra.mxu0 %v385
    %403 = vmatpush.bf16.msra.mxu0 %v384
    %404 = vmatpush.bf16.msra.mxu0 %v383
    %405 = vmatpush.bf16.msra.mxu0 %v382
    %406 = vmatmul.bf16.gmra.mxu0 %v329
    %v407 = vpop.f32.mrf.mxu0
    %v408 = vadd.f32 %v348, %v407
    %v409 = vpop.f32.mrf.mxu0
    %410 = vdwg.mxu0
    %411 = vst [vmem:[#allocation8] sm:$0xff] %v408
    // Predicated region
    $region46: #{tpu_custom_call.1} parent=1 // pred_check
      _
    $region47: #{tpu_custom_call.1} parent=1 // pred_check_branch
      %413 = sbr.rel (0) target = $region49
    $region48: #{tpu_custom_call.1} parent=1 // pred_region
      %415 = vsyncadd [#allocation4], 0
      %s417 = sshll.u32 [#allocation8], 4
      %s418 = int_to_ptr.vmem [resolvable:$true] %s417
      %s419 = sshll.u32 %s8, 4
      %s420 = int_to_ptr.hbm [resolvable:$true] %s419
      %422 = dma.vmem_to_hbm [thread:$0]  %s418, 128, %s420, [#allocation4]
    $region49: #{tpu_custom_call.1} parent=1 // pred_fallthru
      _
    // Predicated region
    $region50: #{tpu_custom_call.1} parent=1 // pred_check
      _
    $region51: #{tpu_custom_call.1} parent=1 // pred_check_branch
      %424 = sbr.rel (0) target = $region53
    $region52: #{tpu_custom_call.1} parent=1 // pred_region
      %426 = vsyncadd [#allocation10], 0
      %s428 = sshll.u32 [#allocation9], 4
      %s429 = int_to_ptr.vmem [resolvable:$true] %s428
      %s430 = sshll.u32 %s9, 4
      %s431 = int_to_ptr.hbm [resolvable:$true] %s430
      %433 = dma.vmem_to_hbm [thread:$0]  %s429, 128, %s431, [#allocation10]
    $region53: #{tpu_custom_call.1} parent=1 // pred_fallthru
      _
    // Predicated region
    $region54: #{tpu_custom_call.1} parent=1 // pred_check
      _
    $region55: #{tpu_custom_call.1} parent=1 // pred_check_branch
      %435 = sbr.rel (0) target = $region57
    $region56: #{tpu_custom_call.1} parent=1 // pred_region
      %437 = dma.done [#allocation4], 128
    $region57: #{tpu_custom_call.1} parent=1 // pred_fallthru
      _
    // Predicated region
    $region58: #{tpu_custom_call.1} parent=1 // pred_check
      _
    $region59: #{tpu_custom_call.1} parent=1 // pred_check_branch
      %439 = sbr.rel (0) target = $region61
    $region60: #{tpu_custom_call.1} parent=1 // pred_region
      %441 = dma.done [#allocation10], 128
    $region61: #{tpu_custom_call.1} parent=1 // pred_fallthru
      _
    %442 = vsyncpa [#allocation3], 1
    %443 = vsyncpa [#allocation6], 1
    %444 = vsyncpa [#allocation4], 1
    %445 = vsyncpa [#allocation10], 1

</llo_original>
